<compile_context>
chip_gen: v7x
topology: tpu7x:2x2x1
jax: 0.10.0
libtpu: 0.0.40
codegen_flags: <defaults>
</compile_context>

<pallas_src>
import functools

import jax
import jax.numpy as jnp
from jax import lax
from jax.experimental import pallas as pl
from jax.experimental.pallas import tpu as pltpu


def _round_up(a, m):
    return ((a + m - 1) // m) * m


def mlp_kernel(x_ref, w1_ref, b1_ref, w2_ref, b2_ref, w3_ref, b3_ref, o_ref):
    # x_ref: (TB, 4) tile of the untransposed input.
    # Weights are PyTorch-native (out, in); biases are (out, 1).
    x = x_ref[...]                                                    # (TB, 4)

    # Layer 1: contract feature dims of W1 (10,4) and x (TB,4) -> (10, TB).
    h1 = lax.dot_general(w1_ref[...], x,
                         dimension_numbers=(((1,), (1,)), ((), ())),
                         preferred_element_type=jnp.float32)
    h1 = jnp.maximum(h1 + b1_ref[...], 0.0)                           # (10, TB)

    h2 = jnp.dot(w2_ref[...], h1, preferred_element_type=jnp.float32)
    h2 = jnp.maximum(h2 + b2_ref[...], 0.0)                           # (10, TB)

    z = jnp.dot(w3_ref[...], h2, preferred_element_type=jnp.float32)
    o_ref[...] = jax.nn.sigmoid(z + b3_ref[...])                      # (1, TB) lane-dense


@functools.partial(jax.jit, static_argnames=("tb",))
def simple_binary_classifier(x, params, tb=8192):
    """x: (B, 4) float32 -> (B, 1) float32."""
    w1, b1, w2, b2, w3, b3 = params
    B, F = x.shape

    # Lane-dense batch tile: multiple of 128, at most `tb` (VMEM-safe cap).
    TB = min(tb, _round_up(B, 128))
    n_tiles = pl.cdiv(B, TB)
    Bp = n_tiles * TB          # output padded to whole tiles (no partial out blocks)

    const_spec = lambda arr: pl.BlockSpec(arr.shape, lambda i: (0, 0))

    out_t = pl.pallas_call(
        mlp_kernel,
        out_shape=jax.ShapeDtypeStruct((1, Bp), jnp.float32),
        grid=(n_tiles,),
        in_specs=[
            pl.BlockSpec((TB, F), lambda i: (i, 0)),   # x tile marches over batch rows
            const_spec(w1), const_spec(b1),
            const_spec(w2), const_spec(b2),
            const_spec(w3), const_spec(b3),
        ],
        out_specs=pl.BlockSpec((1, TB), lambda i: (0, i)),
        compiler_params=pltpu.CompilerParams(
            dimension_semantics=("parallel",),
            vmem_limit_bytes=32 * 1024 * 1024,
        ),
    )(x, w1, b1, w2, b2, w3, b3)

    # Back to the PyTorch-facing (B, 1) layout; drop any batch padding.
    return out_t[0, :B].reshape(B, 1)


def init_params(key):
    """nn.Linear-style init; weights stored PyTorch-native (out, in), biases (out, 1)."""
    def linear(key, fan_in, fan_out):
        kw, kb = jax.random.split(key)
        bound = 1.0 / jnp.sqrt(fan_in)
        w = jax.random.uniform(kw, (fan_out, fan_in), jnp.float32, -bound, bound)
        b = jax.random.uniform(kb, (fan_out, 1), jnp.float32, -bound, bound)
        return w, b

    k1, k2, k3, k4 = jax.random.split(key, 4)
    w1, b1 = linear(k1, 4, 10)       # layer1
    w2, b2 = linear(k2, 10, 10)      # layer2
    _w3u, _b3u = linear(k3, 10, 10)  # layer3: initialized but unused in forward
    w4, b4 = linear(k4, 10, 1)       # output_layer
    return (w1, b1, w2, b2, w4, b4)


def reference(x, params):
    w1, b1, w2, b2, w3, b3 = params
    h = jax.nn.relu(x @ w1.T + b1.T)
    h = jax.nn.relu(h @ w2.T + b2.T)
    return jax.nn.sigmoid(h @ w3.T + b3.T)


if __name__ == "__main__":
    key = jax.random.PRNGKey(0)
    kx, kp, kx2 = jax.random.split(key, 3)

    params = init_params(kp)

    # Small shape consistent with the module (features = 4).
    B = 8
    x = jax.random.normal(kx, (B, 4), dtype=jnp.float32)
    out = jax.block_until_ready(simple_binary_classifier(x, params))
    ref = reference(x, params)
    assert out.shape == (B, 1), out.shape
    assert jnp.allclose(out, ref, atol=1e-5, rtol=1e-5)

    # Exercise the partial trailing input block (B not a multiple of the tile).
    B2 = 1000
    x2 = jax.random.normal(kx2, (B2, 4), dtype=jnp.float32)
    out2 = jax.block_until_ready(simple_binary_classifier(x2, params))
    ref2 = reference(x2, params)
    assert out2.shape == (B2, 1), out2.shape
    assert jnp.allclose(out2, ref2, atol=1e-5, rtol=1e-5)

    print("KERNEL_OK")
</pallas_src>

<mosaic_0001>
module attributes {stable_mosaic.version = 11 : i64} {
  func.func @mlp_kernel(%arg0: i32, %arg1: memref<128x4xf32, #tpu.memory_space<vmem>>, %arg2: memref<10x4xf32, #tpu.memory_space<vmem>>, %arg3: memref<10x1xf32, #tpu.memory_space<vmem>>, %arg4: memref<10x10xf32, #tpu.memory_space<vmem>>, %arg5: memref<10x1xf32, #tpu.memory_space<vmem>>, %arg6: memref<1x10xf32, #tpu.memory_space<vmem>>, %arg7: memref<1x1xf32, #tpu.memory_space<vmem>>, %arg8: memref<1x128xf32, #tpu.memory_space<vmem>>) attributes {dimension_semantics = [#tpu.dimension_semantics<parallel>], iteration_bounds = array<i64: 1>, scalar_prefetch = 0 : i64, scratch_operands = 0 : i64, tpu.core_type = #tpu.core_type<tc>, window_params = [{transform_indices = @transform_0, window_bounds = array<i64: 128, 4>}, {pipeline_mode = #tpu.pipeline_mode<synchronous>, transform_indices = @transform_1, window_bounds = array<i64: 10, 4>}, {pipeline_mode = #tpu.pipeline_mode<synchronous>, transform_indices = @transform_2, window_bounds = array<i64: 10, 1>}, {pipeline_mode = #tpu.pipeline_mode<synchronous>, transform_indices = @transform_3, window_bounds = array<i64: 10, 10>}, {pipeline_mode = #tpu.pipeline_mode<synchronous>, transform_indices = @transform_4, window_bounds = array<i64: 10, 1>}, {pipeline_mode = #tpu.pipeline_mode<synchronous>, transform_indices = @transform_5, window_bounds = array<i64: 1, 10>}, {pipeline_mode = #tpu.pipeline_mode<synchronous>, transform_indices = @transform_6, window_bounds = array<i64: 1, 1>}, {transform_indices = @transform_7, window_bounds = array<i64: 1, 128>}]} {
    %c0 = arith.constant 0 : index
    %c0_0 = arith.constant 0 : index
    %0 = vector.load %arg1[%c0, %c0_0] : memref<128x4xf32, #tpu.memory_space<vmem>>, vector<128x4xf32>
    %c0_1 = arith.constant 0 : index
    %c0_2 = arith.constant 0 : index
    %1 = vector.load %arg2[%c0_1, %c0_2] : memref<10x4xf32, #tpu.memory_space<vmem>>, vector<10x4xf32>
    %cst = arith.constant dense<0.000000e+00> : vector<10x128xf32>
    %2 = tpu.matmul %1, %0, %cst {dimension_numbers = #tpu.dot_dimension_numbers<[1], [1], [0], [0], [0, 0, 1, 0], [], []>} : vector<10x4xf32>, vector<128x4xf32>, vector<10x128xf32> -> vector<10x128xf32>
    %c0_3 = arith.constant 0 : index
    %c0_4 = arith.constant 0 : index
    %3 = vector.load %arg3[%c0_3, %c0_4] : memref<10x1xf32, #tpu.memory_space<vmem>>, vector<10x1xf32>
    %4 = vector.broadcast %3 : vector<10x1xf32> to vector<10x128xf32>
    %5 = arith.addf %2, %4 : vector<10x128xf32>
    %cst_5 = arith.constant 0.000000e+00 : f32
    %6 = vector.broadcast %cst_5 : f32 to vector<10x128xf32>
    %7 = arith.maximumf %5, %6 : vector<10x128xf32>
    %c0_6 = arith.constant 0 : index
    %c0_7 = arith.constant 0 : index
    %8 = vector.load %arg4[%c0_6, %c0_7] : memref<10x10xf32, #tpu.memory_space<vmem>>, vector<10x10xf32>
    %cst_8 = arith.constant dense<0.000000e+00> : vector<10x128xf32>
    %9 = tpu.matmul %8, %7, %cst_8 {dimension_numbers = #tpu.dot_dimension_numbers<[1], [0], [0], [1], [0, 0, 1, 1], [], []>} : vector<10x10xf32>, vector<10x128xf32>, vector<10x128xf32> -> vector<10x128xf32>
    %c0_9 = arith.constant 0 : index
    %c0_10 = arith.constant 0 : index
    %10 = vector.load %arg5[%c0_9, %c0_10] : memref<10x1xf32, #tpu.memory_space<vmem>>, vector<10x1xf32>
    %11 = vector.broadcast %10 : vector<10x1xf32> to vector<10x128xf32>
    %12 = arith.addf %9, %11 : vector<10x128xf32>
    %cst_11 = arith.constant 0.000000e+00 : f32
    %13 = vector.broadcast %cst_11 : f32 to vector<10x128xf32>
    %14 = arith.maximumf %12, %13 : vector<10x128xf32>
    %c0_12 = arith.constant 0 : index
    %c0_13 = arith.constant 0 : index
    %15 = vector.load %arg6[%c0_12, %c0_13] : memref<1x10xf32, #tpu.memory_space<vmem>>, vector<1x10xf32>
    %cst_14 = arith.constant dense<0.000000e+00> : vector<1x128xf32>
    %16 = tpu.matmul %15, %14, %cst_14 {dimension_numbers = #tpu.dot_dimension_numbers<[1], [0], [0], [1], [0, 0, 1, 1], [], []>} : vector<1x10xf32>, vector<10x128xf32>, vector<1x128xf32> -> vector<1x128xf32>
    %c0_15 = arith.constant 0 : index
    %c0_16 = arith.constant 0 : index
    %17 = vector.load %arg7[%c0_15, %c0_16] : memref<1x1xf32, #tpu.memory_space<vmem>>, vector<1x1xf32>
    %18 = vector.broadcast %17 : vector<1x1xf32> to vector<1x128xf32>
    %19 = arith.addf %16, %18 : vector<1x128xf32>
    %20 = arith.negf %19 : vector<1x128xf32>
    %21 = math.exp %20 : vector<1x128xf32>
    %cst_17 = arith.constant 1.000000e+00 : f32
    %22 = vector.broadcast %cst_17 : f32 to vector<1x128xf32>
    %23 = arith.addf %22, %21 : vector<1x128xf32>
    %24 = arith.divf %22, %23 : vector<1x128xf32>
    %c0_18 = arith.constant 0 : index
    %c0_19 = arith.constant 0 : index
    %25 = vector.load %arg8[%c0_18, %c0_19] : memref<1x128xf32, #tpu.memory_space<vmem>>, vector<1x128xf32>
    tpu.vector_store %arg8[%c0_18, %c0_19], %24 {strides = array<i32>} : memref<1x128xf32, #tpu.memory_space<vmem>>, vector<1x128xf32>,
    return
  }
  func.func @transform_0(%arg0: i32) -> (i32, i32) {
    %c0_i32 = arith.constant 0 : i32
    %c0_i32_0 = arith.constant 0 : i32
    return %arg0, %c0_i32 : i32, i32
  }
  func.func @transform_1(%arg0: i32) -> (i32, i32) {
    %c0_i32 = arith.constant 0 : i32
    %c0_i32_0 = arith.constant 0 : i32
    %c0_i32_1 = arith.constant 0 : i32
    return %c0_i32, %c0_i32_0 : i32, i32
  }
  func.func @transform_2(%arg0: i32) -> (i32, i32) {
    %c0_i32 = arith.constant 0 : i32
    %c0_i32_0 = arith.constant 0 : i32
    %c0_i32_1 = arith.constant 0 : i32
    return %c0_i32, %c0_i32_0 : i32, i32
  }
  func.func @transform_3(%arg0: i32) -> (i32, i32) {
    %c0_i32 = arith.constant 0 : i32
    %c0_i32_0 = arith.constant 0 : i32
    %c0_i32_1 = arith.constant 0 : i32
    return %c0_i32, %c0_i32_0 : i32, i32
  }
  func.func @transform_4(%arg0: i32) -> (i32, i32) {
    %c0_i32 = arith.constant 0 : i32
    %c0_i32_0 = arith.constant 0 : i32
    %c0_i32_1 = arith.constant 0 : i32
    return %c0_i32, %c0_i32_0 : i32, i32
  }
  func.func @transform_5(%arg0: i32) -> (i32, i32) {
    %c0_i32 = arith.constant 0 : i32
    %c0_i32_0 = arith.constant 0 : i32
    %c0_i32_1 = arith.constant 0 : i32
    return %c0_i32, %c0_i32_0 : i32, i32
  }
  func.func @transform_6(%arg0: i32) -> (i32, i32) {
    %c0_i32 = arith.constant 0 : i32
    %c0_i32_0 = arith.constant 0 : i32
    %c0_i32_1 = arith.constant 0 : i32
    return %c0_i32, %c0_i32_0 : i32, i32
  }
  func.func @transform_7(%arg0: i32) -> (i32, i32) {
    %c0_i32 = arith.constant 0 : i32
    %c0_i32_0 = arith.constant 0 : i32
    return %c0_i32, %arg0 : i32, i32
  }
}

</mosaic_0001>

<llo_original>
// kernel: simple_binary_classifier.1
$region0: #{simple_binary_classifier.1}
  #allocation0 [shape = 'u32[]', space=smem, size = 0x4, offset = 0x4, fixed_abs, tag = 'smem constant byte address 0x4 - core index']
  #allocation1 [shape = 'u32[144,128]{1,0:T(1,128)}', space=vmem, size = 0x12000, scoped, tag = 'internal scratch']
  #allocation2 [shape = 'f32[1,1]{1,0:T(1,128)S(1)}', space=vmem, size = 0x200, scoped, tag = 'scoped memory for simple_binary_classifier.1']
  %s0 = inlined_call_operand.vmem [shape: f32[8,4], index: 0, kind: input, shape index: {}]
  %s1 = inlined_call_operand.vmem [shape: f32[10,4], index: 1, kind: input, shape index: {}]
  %s2 = inlined_call_operand.vmem [shape: f32[10,1], index: 2, kind: input, shape index: {}]
  %s3 = inlined_call_operand.vmem [shape: f32[10,10], index: 3, kind: input, shape index: {}]
  %s4 = inlined_call_operand.vmem [shape: f32[10,1], index: 4, kind: input, shape index: {}]
  %s5 = inlined_call_operand.vmem [shape: f32[1,10], index: 5, kind: input, shape index: {}]
  %s6 = inlined_call_operand.<no memory space> [shape: f32[1,1], index: 6, kind: input, shape index: {}]
  %s7 = inlined_call_operand.vmem [shape: f32[1,128], index: 7, kind: output, shape index: {}]
  %s8 = sld [smem:[#allocation0]]
  $region38: #{simple_binary_classifier.1} parent=0
    _
  %s10 = ssub.s32 1, %s8
  %s11 = scalar_select 0, %s10, %s8
  %v12 = vstv %s6
  %13 = vst [vmem:[#allocation2] sm:$0x1] %v12
  // Predicated region
  $region2: #{simple_binary_classifier.1} parent=0 // pred_check
    _
  $region3: #{simple_binary_classifier.1} parent=0 // pred_check_branch
    %15 = sbr.rel (0) target = $region5
  $region4: #{simple_binary_classifier.1} parent=0 // pred_region
    _
  $region5: #{simple_binary_classifier.1} parent=0 // pred_fallthru
    _
  // Predicated region
  $region6: #{simple_binary_classifier.1} parent=0 // pred_check
    _
  $region7: #{simple_binary_classifier.1} parent=0 // pred_check_branch
    %17 = sbr.rel (0) target = $region9
  $region8: #{simple_binary_classifier.1} parent=0 // pred_region
    _
  $region9: #{simple_binary_classifier.1} parent=0 // pred_fallthru
    _
  // Predicated region
  $region10: #{simple_binary_classifier.1} parent=0 // pred_check
    _
  $region11: #{simple_binary_classifier.1} parent=0 // pred_check_branch
    %19 = sbr.rel (0) target = $region13
  $region12: #{simple_binary_classifier.1} parent=0 // pred_region
    _
  $region13: #{simple_binary_classifier.1} parent=0 // pred_fallthru
    _
  // Predicated region
  $region14: #{simple_binary_classifier.1} parent=0 // pred_check
    _
  $region15: #{simple_binary_classifier.1} parent=0 // pred_check_branch
    %21 = sbr.rel (0) target = $region17
  $region16: #{simple_binary_classifier.1} parent=0 // pred_region
    _
  $region17: #{simple_binary_classifier.1} parent=0 // pred_fallthru
    _
  // Predicated region
  $region18: #{simple_binary_classifier.1} parent=0 // pred_check
    _
  $region19: #{simple_binary_classifier.1} parent=0 // pred_check_branch
    %23 = sbr.rel (0) target = $region21
  $region20: #{simple_binary_classifier.1} parent=0 // pred_region
    _
  $region21: #{simple_binary_classifier.1} parent=0 // pred_fallthru
    _
  // Predicated region
  $region22: #{simple_binary_classifier.1} parent=0 // pred_check
    _
  $region23: #{simple_binary_classifier.1} parent=0 // pred_check_branch
    %25 = sbr.rel (0) target = $region25
  $region24: #{simple_binary_classifier.1} parent=0 // pred_region
    _
  $region25: #{simple_binary_classifier.1} parent=0 // pred_fallthru
    _
  // Predicated region
  $region26: #{simple_binary_classifier.1} parent=0 // pred_check
    _
  $region27: #{simple_binary_classifier.1} parent=0 // pred_check_branch
    %27 = sbr.rel (0) target = $region29
  $region28: #{simple_binary_classifier.1} parent=0 // pred_region
    _
  $region29: #{simple_binary_classifier.1} parent=0 // pred_fallthru
    _
  %v28 = vld [vmem:[%s0] sm:$0xff]
  %v29 = vld [vmem:[%s0 + $0x8] sm:$0xff]
  %v30 = vld [vmem:[%s0 + $0x10] sm:$0xff]
  %v31 = vld [vmem:[%s0 + $0x18] sm:$0xff]
  %v32 = vld [vmem:[%s0 + $0x20] sm:$0xff]
  %v33 = vld [vmem:[%s0 + $0x28] sm:$0xff]
  %v34 = vld [vmem:[%s0 + $0x30] sm:$0xff]
  %v35 = vld [vmem:[%s0 + $0x38] sm:$0xff]
  %v36 = vld [vmem:[%s0 + $0x40] sm:$0xff]
  %v37 = vld [vmem:[%s0 + $0x48] sm:$0xff]
  %v38 = vld [vmem:[%s0 + $0x50] sm:$0xff]
  %v39 = vld [vmem:[%s0 + $0x58] sm:$0xff]
  %v40 = vld [vmem:[%s0 + $0x60] sm:$0xff]
  %v41 = vld [vmem:[%s0 + $0x68] sm:$0xff]
  %v42 = vld [vmem:[%s0 + $0x70] sm:$0xff]
  %v43 = vld [vmem:[%s0 + $0x78] sm:$0xff]
  %v44 = vld [vmem:[%s1] sm:$0xff]
  %v45 = vld [vmem:[%s1 + $0x8] sm:$0x3]
  %v46 = vld [vmem:[%s2] sm:$0xff]
  %v47 = vld [vmem:[%s2 + $0x8] sm:$0x3]
  %49 = vset.pattern.permute.xlu0 0
  %50 = vperm.xlu0 %49, %v46
  %v51 = vpop.permute.xlu0 %50
  %54 = vset.pattern.permute.xlu0 0
  %55 = vperm.xlu0 %54, %v47
  %v56 = vpop.permute.xlu0 %55
  %vm58 = vcmask 31744
  %v60 = vsel %vm58, %v44, 0
  %v63 = vsel %vm58, %v45, 0
  %v66 = vsel %vm58, %v28, 0
  %v69 = vsel %vm58, %v29, 0
  %v72 = vsel %vm58, %v30, 0
  %v75 = vsel %vm58, %v31, 0
  %v78 = vsel %vm58, %v32, 0
  %v81 = vsel %vm58, %v33, 0
  %v84 = vsel %vm58, %v34, 0
  %v87 = vsel %vm58, %v35, 0
  %v90 = vsel %vm58, %v36, 0
  %v93 = vsel %vm58, %v37, 0
  %v96 = vsel %vm58, %v38, 0
  %v99 = vsel %vm58, %v39, 0
  %v102 = vsel %vm58, %v40, 0
  %v105 = vsel %vm58, %v41, 0
  %v108 = vsel %vm58, %v42, 0
  %v111 = vsel %vm58, %v43, 0
  %113 = vmatprep.subr.mxu0 0.0
  %114 = vmatpush1.xpose.msra.mxu0 %v66
  %115 = vmatprep.subr.mxu0 0.0
  %116 = vmatpush1.xpose.msra.mxu0 %v69
  %117 = vmatprep.subr.mxu0 0.0
  %118 = vmatpush1.xpose.msra.mxu0 %v72
  %119 = vmatprep.subr.mxu0 0.0
  %120 = vmatpush1.xpose.msra.mxu0 %v75
  %121 = vmatprep.subr.mxu0 0.0
  %122 = vmatpush1.xpose.msra.mxu0 %v78
  %123 = vmatprep.subr.mxu0 0.0
  %124 = vmatpush1.xpose.msra.mxu0 %v81
  %125 = vmatprep.subr.mxu0 0.0
  %126 = vmatpush1.xpose.msra.mxu0 %v84
  %127 = vmatprep.subr.mxu0 0.0
  %128 = vmatpush1.xpose.msra.mxu0 %v87
  %129 = vmatprep.subr.mxu0 0.0
  %130 = vmatpush1.xpose.msra.mxu0 %v90
  %131 = vmatprep.subr.mxu0 0.0
  %132 = vmatpush1.xpose.msra.mxu0 %v93
  %133 = vmatprep.subr.mxu0 0.0
  %134 = vmatpush1.xpose.msra.mxu0 %v96
  %135 = vmatprep.subr.mxu0 0.0
  %136 = vmatpush1.xpose.msra.mxu0 %v99
  %137 = vmatprep.subr.mxu0 0.0
  %138 = vmatpush1.xpose.msra.mxu0 %v102
  %139 = vmatprep.subr.mxu0 0.0
  %140 = vmatpush1.xpose.msra.mxu0 %v105
  %141 = vmatprep.subr.mxu0 0.0
  %142 = vmatpush1.xpose.msra.mxu0 %v108
  %143 = vmatprep.subr.mxu0 0.0
  %144 = vmatpush1.xpose.msra.mxu0 %v111
  %145 = vmatprep.subr.mxu0 0.0
  %146 = vmatpush1.xpose.msra.mxu0 0.0
  %147 = vmatprep.subr.mxu0 0.0
  %148 = vmatpush1.xpose.msra.mxu0 0.0
  %149 = vmatprep.subr.mxu0 0.0
  %150 = vmatpush1.xpose.msra.mxu0 0.0
  %151 = vmatprep.subr.mxu0 0.0
  %152 = vmatpush1.xpose.msra.mxu0 0.0
  %153 = vmatprep.subr.mxu0 0.0
  %154 = vmatpush1.xpose.msra.mxu0 0.0
  %155 = vmatprep.subr.mxu0 0.0
  %156 = vmatpush1.xpose.msra.mxu0 0.0
  %157 = vmatprep.subr.mxu0 0.0
  %158 = vmatpush1.xpose.msra.mxu0 0.0
  %159 = vmatprep.subr.mxu0 0.0
  %160 = vmatpush1.xpose.msra.mxu0 0.0
  %161 = vmatprep.subr.mxu0 0.0
  %162 = vmatpush1.xpose.msra.mxu0 0.0
  %163 = vmatprep.subr.mxu0 0.0
  %164 = vmatpush1.xpose.msra.mxu0 0.0
  %165 = vmatprep.subr.mxu0 0.0
  %166 = vmatpush1.xpose.msra.mxu0 0.0
  %167 = vmatprep.subr.mxu0 0.0
  %168 = vmatpush1.xpose.msra.mxu0 0.0
  %169 = vmatprep.subr.mxu0 0.0
  %170 = vmatpush1.xpose.msra.mxu0 0.0
  %171 = vmatprep.subr.mxu0 0.0
  %172 = vmatpush1.xpose.msra.mxu0 0.0
  %173 = vmatprep.subr.mxu0 0.0
  %174 = vmatpush1.xpose.msra.mxu0 0.0
  %175 = vmatprep.subr.mxu0 0.0
  %176 = vmatpush1.xpose.msra.mxu0 0.0
  %177 = vmatprep.mubr.f32.mxu0 0.0
  %178 = vmatmul.mubr.f32.gmra.mrb[0].mxu0 %v60
  %v179 = vpop.f32.mrb[0].mxu0
  %v180 = vadd.f32 %v51, %v179
  %v181 = vpop.f32.mrb[0].mxu0
  %182 = vmatprep.mubr.f32.mxu0 0.0
  %183 = vmatmul.mubr.f32.gmra.mrb[0].mxu0 %v63
  %v184 = vpop.f32.mrb[0].mxu0
  %v185 = vadd.f32 %v56, %v184
  %v186 = vpop.f32.mrb[0].mxu0
  %187 = vdwg.mxu0
  %v188 = vmax.f32 %v180, 0.0
  %v189 = vmax.f32 %v185, 0.0
  %v190 = vld [vmem:[%s3] sm:$0xff]
  %v191 = vld [vmem:[%s3 + $0x8] sm:$0x3]
  %v192 = vld [vmem:[%s4] sm:$0xff]
  %v193 = vld [vmem:[%s4 + $0x8] sm:$0x3]
  %195 = vset.pattern.permute.xlu0 0
  %196 = vperm.xlu0 %195, %v192
  %v197 = vpop.permute.xlu0 %196
  %200 = vset.pattern.permute.xlu0 0
  %201 = vperm.xlu0 %200, %v193
  %v202 = vpop.permute.xlu0 %201
  %vm204 = vcmask 80896
  %v206 = vsel %vm204, %v190, 0
  %v209 = vsel %vm204, %v191, 0
  %vm211 = vcmask 1041408
  %v213 = vsel %vm211, %v189, 0
  %215 = vmatprep.subr.mxu0 0.0
  %216 = vmatpush1.msra.mxu0 %v188
  %217 = vmatprep.subr.mxu0 0.0
  %218 = vmatpush1.msra.mxu0 %v213
  %219 = vmatprep.subr.mxu0 0.0
  %220 = vmatpush1.msra.mxu0 0.0
  %221 = vmatprep.subr.mxu0 0.0
  %222 = vmatpush1.msra.mxu0 0.0
  %223 = vmatprep.subr.mxu0 0.0
  %224 = vmatpush1.msra.mxu0 0.0
  %225 = vmatprep.subr.mxu0 0.0
  %226 = vmatpush1.msra.mxu0 0.0
  %227 = vmatprep.subr.mxu0 0.0
  %228 = vmatpush1.msra.mxu0 0.0
  %229 = vmatprep.subr.mxu0 0.0
  %230 = vmatpush1.msra.mxu0 0.0
  %231 = vmatprep.subr.mxu0 0.0
  %232 = vmatpush1.msra.mxu0 0.0
  %233 = vmatprep.subr.mxu0 0.0
  %234 = vmatpush1.msra.mxu0 0.0
  %235 = vmatprep.subr.mxu0 0.0
  %236 = vmatpush1.msra.mxu0 0.0
  %237 = vmatprep.subr.mxu0 0.0
  %238 = vmatpush1.msra.mxu0 0.0
  %239 = vmatprep.subr.mxu0 0.0
  %240 = vmatpush1.msra.mxu0 0.0
  %241 = vmatprep.subr.mxu0 0.0
  %242 = vmatpush1.msra.mxu0 0.0
  %243 = vmatprep.subr.mxu0 0.0
  %244 = vmatpush1.msra.mxu0 0.0
  %245 = vmatprep.subr.mxu0 0.0
  %246 = vmatpush1.msra.mxu0 0.0
  %247 = vmatprep.subr.mxu0 0.0
  %248 = vmatpush1.msra.mxu0 0.0
  %249 = vmatprep.subr.mxu0 0.0
  %250 = vmatpush1.msra.mxu0 0.0
  %251 = vmatprep.subr.mxu0 0.0
  %252 = vmatpush1.msra.mxu0 0.0
  %253 = vmatprep.subr.mxu0 0.0
  %254 = vmatpush1.msra.mxu0 0.0
  %255 = vmatprep.subr.mxu0 0.0
  %256 = vmatpush1.msra.mxu0 0.0
  %257 = vmatprep.subr.mxu0 0.0
  %258 = vmatpush1.msra.mxu0 0.0
  %259 = vmatprep.subr.mxu0 0.0
  %260 = vmatpush1.msra.mxu0 0.0
  %261 = vmatprep.subr.mxu0 0.0
  %262 = vmatpush1.msra.mxu0 0.0
  %263 = vmatprep.subr.mxu0 0.0
  %264 = vmatpush1.msra.mxu0 0.0
  %265 = vmatprep.subr.mxu0 0.0
  %266 = vmatpush1.msra.mxu0 0.0
  %267 = vmatprep.subr.mxu0 0.0
  %268 = vmatpush1.msra.mxu0 0.0
  %269 = vmatprep.subr.mxu0 0.0
  %270 = vmatpush1.msra.mxu0 0.0
  %271 = vmatprep.subr.mxu0 0.0
  %272 = vmatpush1.msra.mxu0 0.0
  %273 = vmatprep.subr.mxu0 0.0
  %274 = vmatpush1.msra.mxu0 0.0
  %275 = vmatprep.subr.mxu0 0.0
  %276 = vmatpush1.msra.mxu0 0.0
  %277 = vmatprep.subr.mxu0 0.0
  %278 = vmatpush1.msra.mxu0 0.0
  %279 = vmatprep.mubr.f32.mxu0 0.0
  %280 = vmatmul.mubr.f32.gmra.mrb[0].mxu0 %v206
  %v281 = vpop.f32.mrb[0].mxu0
  %v282 = vadd.f32 %v197, %v281
  %v283 = vpop.f32.mrb[0].mxu0
  %284 = vmatprep.mubr.f32.mxu0 0.0
  %285 = vmatmul.mubr.f32.gmra.mrb[0].mxu0 %v209
  %v286 = vpop.f32.mrb[0].mxu0
  %v287 = vadd.f32 %v202, %v286
  %v288 = vpop.f32.mrb[0].mxu0
  %289 = vdwg.mxu0
  %v290 = vmax.f32 %v282, 0.0
  %v291 = vmax.f32 %v287, 0.0
  %v292 = vld [vmem:[%s5] sm:$0x1]
  %v293 = vld [vmem:[#allocation2] sm:$0x1]
  %295 = vset.pattern.permute.xlu0 0
  %296 = vperm.xlu0 %295, %v293
  %v297 = vpop.permute.xlu0 %296
  %v299 = vlaneseq
  %v300 = vshrl.u32 %v299, 7
  %v301 = vsub.s32 0, %v300
  %v302 = vrot.slane %v297, %v301
  %v304 = vsel %vm204, %v292, 0
  %v307 = vsel %vm211, %v291, 0
  %309 = vmatprep.subr.mxu0 0.0
  %310 = vmatpush1.msra.mxu0 %v290
  %311 = vmatprep.subr.mxu0 0.0
  %312 = vmatpush1.msra.mxu0 %v307
  %313 = vmatprep.subr.mxu0 0.0
  %314 = vmatpush1.msra.mxu0 0.0
  %315 = vmatprep.subr.mxu0 0.0
  %316 = vmatpush1.msra.mxu0 0.0
  %317 = vmatprep.subr.mxu0 0.0
  %318 = vmatpush1.msra.mxu0 0.0
  %319 = vmatprep.subr.mxu0 0.0
  %320 = vmatpush1.msra.mxu0 0.0
  %321 = vmatprep.subr.mxu0 0.0
  %322 = vmatpush1.msra.mxu0 0.0
  %323 = vmatprep.subr.mxu0 0.0
  %324 = vmatpush1.msra.mxu0 0.0
  %325 = vmatprep.subr.mxu0 0.0
  %326 = vmatpush1.msra.mxu0 0.0
  %327 = vmatprep.subr.mxu0 0.0
  %328 = vmatpush1.msra.mxu0 0.0
  %329 = vmatprep.subr.mxu0 0.0
  %330 = vmatpush1.msra.mxu0 0.0
  %331 = vmatprep.subr.mxu0 0.0
  %332 = vmatpush1.msra.mxu0 0.0
  %333 = vmatprep.subr.mxu0 0.0
  %334 = vmatpush1.msra.mxu0 0.0
  %335 = vmatprep.subr.mxu0 0.0
  %336 = vmatpush1.msra.mxu0 0.0
  %337 = vmatprep.subr.mxu0 0.0
  %338 = vmatpush1.msra.mxu0 0.0
  %339 = vmatprep.subr.mxu0 0.0
  %340 = vmatpush1.msra.mxu0 0.0
  %341 = vmatprep.subr.mxu0 0.0
  %342 = vmatpush1.msra.mxu0 0.0
  %343 = vmatprep.subr.mxu0 0.0
  %344 = vmatpush1.msra.mxu0 0.0
  %345 = vmatprep.subr.mxu0 0.0
  %346 = vmatpush1.msra.mxu0 0.0
  %347 = vmatprep.subr.mxu0 0.0
  %348 = vmatpush1.msra.mxu0 0.0
  %349 = vmatprep.subr.mxu0 0.0
  %350 = vmatpush1.msra.mxu0 0.0
  %351 = vmatprep.subr.mxu0 0.0
  %352 = vmatpush1.msra.mxu0 0.0
  %353 = vmatprep.subr.mxu0 0.0
  %354 = vmatpush1.msra.mxu0 0.0
  %355 = vmatprep.subr.mxu0 0.0
  %356 = vmatpush1.msra.mxu0 0.0
  %357 = vmatprep.subr.mxu0 0.0
  %358 = vmatpush1.msra.mxu0 0.0
  %359 = vmatprep.subr.mxu0 0.0
  %360 = vmatpush1.msra.mxu0 0.0
  %361 = vmatprep.subr.mxu0 0.0
  %362 = vmatpush1.msra.mxu0 0.0
  %363 = vmatprep.subr.mxu0 0.0
  %364 = vmatpush1.msra.mxu0 0.0
  %365 = vmatprep.subr.mxu0 0.0
  %366 = vmatpush1.msra.mxu0 0.0
  %367 = vmatprep.subr.mxu0 0.0
  %368 = vmatpush1.msra.mxu0 0.0
  %369 = vmatprep.subr.mxu0 0.0
  %370 = vmatpush1.msra.mxu0 0.0
  %371 = vmatprep.subr.mxu0 0.0
  %372 = vmatpush1.msra.mxu0 0.0
  %373 = vmatprep.mubr.f32.mxu0 0.0
  %374 = vmatmul.mubr.f32.gmra.mrb[0].mxu0 %v304
  %v375 = vpop.f32.mrb[0].mxu0
  %v376 = vadd.f32 %v302, %v375
  %v377 = vpop.f32.mrb[0].mxu0
  %378 = vdwg.mxu0
  %v379 = vxor.u32 %v376, 2147483648
  %v380 = vmul.f32 %v379, 1.442695
  %v381 = vpow.pop %v380
  %v382 = vadd.f32 %v381, 1.0
  %v383 = vrcp.pop %v382
  %v384 = vmul.f32 1.0, %v383
  %385 = vst [vmem:[%s7] sm:$0x1] %v384
  // Predicated region
  $region30: #{simple_binary_classifier.1} parent=0 // pred_check
    _
  $region31: #{simple_binary_classifier.1} parent=0 // pred_check_branch
    %387 = sbr.rel (0) target = $region33
  $region32: #{simple_binary_classifier.1} parent=0 // pred_region
    _
  $region33: #{simple_binary_classifier.1} parent=0 // pred_fallthru
    _
  // Predicated region
  $region34: #{simple_binary_classifier.1} parent=0 // pred_check
    _
  $region35: #{simple_binary_classifier.1} parent=0 // pred_check_branch
    %389 = sbr.rel (0) target = $region37
  $region36: #{simple_binary_classifier.1} parent=0 // pred_region
    _
  $region37: #{simple_binary_classifier.1} parent=0 // pred_fallthru
    _

</llo_original>
